<compile_context>
chip_gen: v7x
topology: tpu7x:2x2x1
jax: 0.10.0
libtpu: 0.0.40
codegen_flags: <defaults>
</compile_context>

<pallas_src>
import functools

import jax
import jax.numpy as jnp
from jax.experimental import pallas as pl
from jax.experimental.pallas import tpu as pltpu


def _round_up(x, m):
    return ((x + m - 1) // m) * m


def make_cnn_kernel(b_tile, s_pad, fs_max, n_pad):
    """Builds a Pallas kernel closed over the static CNN configuration."""
    m = b_tile * s_pad  # rows of the fused conv matmul

    def kernel(emb_ref, w_ref, bias_ref, mask_ref, fcw_ref, fcb_ref, out_ref):
        # emb_ref : [b_tile*s_pad, E]      bf16  (flattened batch tile)
        # w_ref   : [fs_max*E, n_pad]      bf16  (tap-stacked, im2col-ordered)
        # bias_ref: [1, n_pad]             f32
        # mask_ref: [s_pad, n_pad]         f32   (1.0 at valid conv positions)
        # fcw_ref : [n_pad, out_pad]       f32
        # fcb_ref : [1, out_pad]           f32
        # out_ref : [b_tile, out_pad]      f32
        x = emb_ref[...]                                   # [M, E] bf16

        # In-VMEM im2col: concatenate fs_max row-shifted bf16 copies along the
        # feature (lane) axis so the whole multi-size conv is ONE MXU matmul
        # with K = fs_max*E.  Shifted rows that cross a sample boundary only
        # ever feed output positions that the validity mask zeroes below (and
        # taps j >= fs have zero weights per filter), so pooling is unaffected.
        parts = [x] + [jnp.roll(x, -j, axis=0) for j in range(1, fs_max)]
        xcat = jnp.concatenate(parts, axis=1)              # [M, fs_max*E] bf16

        acc = jnp.dot(xcat, w_ref[...],
                      preferred_element_type=jnp.float32)  # [M, n_pad] f32

        # Bias + validity mask + relu fused into a single pass:
        # mask ∈ {0,1}  =>  max((acc+b)*mask, 0) == mask * relu(acc+b).
        conv = jnp.maximum(
            (acc + bias_ref[...]).reshape(b_tile, s_pad, n_pad)
            * mask_ref[...][None], 0.0)
        pooled = jnp.max(conv, axis=1)                     # [b_tile, n_pad] f32

        out_ref[...] = (jnp.dot(pooled, fcw_ref[...],
                                preferred_element_type=jnp.float32)
                        + fcb_ref[...])

    return kernel


def cnn_forward(text, params, *, n_filters, filter_sizes, output_dim,
                pad_idx=0):
    """text: int32 [B, S].  Returns logits [B, output_dim] (float32)."""
    emb_table = params["embedding"]                 # [V, E], pad row is zero
    B, S = text.shape
    E = emb_table.shape[1]
    F = n_filters
    n_fs = len(filter_sizes)
    fs_max = max(filter_sizes)
    # PyTorch would raise if the sequence is shorter than the largest filter.
    assert S >= fs_max, "sequence shorter than the largest filter size"

    # Padded sizes: lane-dense channel/output dims, sublane-friendly S.
    n_pad = _round_up(n_fs * F, 128)
    out_pad = _round_up(output_dim, 128)
    s_pad = _round_up(S, 8)
    assert s_pad >= S  # required by the circular-shift masking argument

    # Batch-tile heuristic: aim for >= ~4 grid steps (>= 2 per TC on v7x) while
    # letting tiles grow to 256 rows for large B to amortize per-step overhead.
    b_tile = _round_up(max(8, min(256, _round_up(B, 8) // 4)), 8)
    b_pad = _round_up(B, b_tile)

    # Pad the tiny int32 token ids BEFORE the gather so the large bf16
    # embedding activation is produced directly in its padded layout (no
    # separate pad copy of the biggest tensor).  The table is cast to bf16
    # before the gather to halve gather read/write traffic.
    # TODO(synk): fuse the gather into the kernel (scalar-prefetch `text` +
    # DMA gather from an HBM-resident table) to remove the remaining HBM
    # round-trip of the [B,S,E] activation.
    text_p = jnp.full((b_pad, s_pad), pad_idx, dtype=jnp.int32)
    text_p = text_p.at[:B, :S].set(text)
    emb = jnp.take(emb_table.astype(jnp.bfloat16), text_p, axis=0)
    emb = emb.reshape(b_pad * s_pad, E)     # major-dim merge: bitcast, no copy

    # Stack conv weights over taps and filter sizes, im2col-ordered:
    # rows j*E:(j+1)*E of w_cat hold tap j; column block fi*F:(fi+1)*F holds
    # filter size filter_sizes[fi]; taps past that filter's size (and padded
    # lanes) are zero — required for correctness of the circular-shift im2col.
    w_taps = jnp.zeros((fs_max, E, n_pad), jnp.float32)
    bias = jnp.zeros((1, n_pad), jnp.float32)
    mask = jnp.zeros((s_pad, n_pad), jnp.float32)
    for fi, fs in enumerate(filter_sizes):
        c0 = fi * F
        w_taps = w_taps.at[:fs, :, c0:c0 + F].set(params["conv_w"][fi])
        bias = bias.at[:, c0:c0 + F].set(params["conv_b"][fi])
        mask = mask.at[:S - fs + 1, c0:c0 + F].set(1.0)   # valid window starts
    w_cat = w_taps.reshape(fs_max * E, n_pad).astype(jnp.bfloat16)

    fc_w = jnp.zeros((n_pad, out_pad), jnp.float32)
    fc_w = fc_w.at[:n_fs * F, :output_dim].set(params["fc_w"])
    fc_b = jnp.zeros((1, out_pad), jnp.float32)
    fc_b = fc_b.at[:, :output_dim].set(params["fc_b"])

    kernel = make_cnn_kernel(b_tile, s_pad, fs_max, n_pad)
    grid = (b_pad // b_tile,)

    # Note: the weight/bias/mask/fc operands are grid-invariant; Pallas skips
    # re-DMA for constant index maps, so explicit Buffered(1) hygiene is
    # omitted (footprint is ~0.2 MiB).
    out = pl.pallas_call(
        kernel,
        out_shape=jax.ShapeDtypeStruct((b_pad, out_pad), jnp.float32),
        grid=grid,
        in_specs=[
            pl.BlockSpec((b_tile * s_pad, E), lambda i: (i, 0)),       # emb tile
            pl.BlockSpec((fs_max * E, n_pad), lambda i: (0, 0)),       # conv w
            pl.BlockSpec((1, n_pad), lambda i: (0, 0)),                # conv bias
            pl.BlockSpec((s_pad, n_pad), lambda i: (0, 0)),            # valid mask
            pl.BlockSpec((n_pad, out_pad), lambda i: (0, 0)),          # fc w
            pl.BlockSpec((1, out_pad), lambda i: (0, 0)),              # fc bias
        ],
        out_specs=pl.BlockSpec((b_tile, out_pad), lambda i: (i, 0)),
        compiler_params=pltpu.CompilerParams(
            dimension_semantics=("parallel",),
            # < 8 MiB actual footprint even at b_tile=256; 32 MiB scoped limit
            # is safe on every generation (re-derive vs 64 MiB if scaled on v7x).
            vmem_limit_bytes=32 * 1024 * 1024),
    )(emb, w_cat, bias, mask, fc_w, fc_b)

    return out[:B, :output_dim]


def cnn_reference(text, params, *, n_filters, filter_sizes, output_dim):
    """Pure-JAX f32 reference replicating the PyTorch forward (eval mode)."""
    emb = jnp.take(params["embedding"], text, axis=0).astype(jnp.float32)
    B, S, E = emb.shape
    pooled = []
    for fi, fs in enumerate(filter_sizes):
        w = params["conv_w"][fi]                   # [fs, E, F]
        b = params["conv_b"][fi]                   # [1, F]
        T = S - fs + 1
        acc = jnp.zeros((B, T, n_filters), jnp.float32)
        for j in range(fs):
            acc = acc + jnp.einsum("bte,ef->btf", emb[:, j:j + T, :], w[j])
        conv = jax.nn.relu(acc + b[None])          # [B, T, F]
        pooled.append(jnp.max(conv, axis=1))       # [B, F]
    cat = jnp.concatenate(pooled, axis=1)          # [B, n_fs*F]
    return cat @ params["fc_w"] + params["fc_b"]


def init_params(key, *, vocab_size, embedding_dim, n_filters, filter_sizes,
                output_dim, pad_idx):
    keys = jax.random.split(key, 2 * len(filter_sizes) + 3)
    emb = 0.1 * jax.random.normal(keys[0], (vocab_size, embedding_dim),
                                  jnp.float32)
    emb = emb.at[pad_idx].set(0.0)                 # padding_idx row is zero
    conv_w, conv_b = [], []
    for fi, fs in enumerate(filter_sizes):
        # PyTorch Conv2d weight is [F, 1, fs, E]; store transposed [fs, E, F]
        # so the per-tap matmul needs no in-kernel transpose.
        conv_w.append(0.1 * jax.random.normal(
            keys[1 + 2 * fi], (fs, embedding_dim, n_filters), jnp.float32))
        conv_b.append(0.1 * jax.random.normal(
            keys[2 + 2 * fi], (1, n_filters), jnp.float32))
    fc_w = 0.1 * jax.random.normal(
        keys[-2], (len(filter_sizes) * n_filters, output_dim), jnp.float32)
    fc_b = 0.1 * jax.random.normal(keys[-1], (1, output_dim), jnp.float32)
    return {"embedding": emb, "conv_w": conv_w, "conv_b": conv_b,
            "fc_w": fc_w, "fc_b": fc_b}


if __name__ == "__main__":
    # Small, CNN-consistent config.
    VOCAB, E, F, FS, OUT, PAD = 50, 32, 8, (3, 4, 5), 2, 0
    B, S = 2, 16

    key = jax.random.PRNGKey(0)
    pkey, tkey = jax.random.split(key)
    params = init_params(pkey, vocab_size=VOCAB, embedding_dim=E, n_filters=F,
                         filter_sizes=FS, output_dim=OUT, pad_idx=PAD)
    text = jax.random.randint(tkey, (B, S), 0, VOCAB, dtype=jnp.int32)

    fwd = jax.jit(functools.partial(cnn_forward, n_filters=F, filter_sizes=FS,
                                    output_dim=OUT, pad_idx=PAD))
    out = jax.block_until_ready(fwd(text, params))

    ref = cnn_reference(text, params, n_filters=F, filter_sizes=FS,
                        output_dim=OUT)
    assert out.shape == (B, OUT)
    # bf16 embeddings/conv weights with f32 accumulation vs pure-f32 reference.
    assert jnp.allclose(out, ref, atol=1e-2, rtol=1e-2), (out, ref)
    print("KERNEL_OK")
</pallas_src>

<mosaic_0001>
module attributes {stable_mosaic.version = 11 : i64} {
  func.func @kernel(%arg0: i32, %arg1: memref<128x32xbf16, #tpu.memory_space<vmem>>, %arg2: memref<160x128xbf16, #tpu.memory_space<vmem>>, %arg3: memref<1x128xf32, #tpu.memory_space<vmem>>, %arg4: memref<16x128xf32, #tpu.memory_space<vmem>>, %arg5: memref<128x128xf32, #tpu.memory_space<vmem>>, %arg6: memref<1x128xf32, #tpu.memory_space<vmem>>, %arg7: memref<8x128xf32, #tpu.memory_space<vmem>>) attributes {dimension_semantics = [#tpu.dimension_semantics<parallel>], iteration_bounds = array<i64: 1>, scalar_prefetch = 0 : i64, scratch_operands = 0 : i64, tpu.core_type = #tpu.core_type<tc>, window_params = [{transform_indices = @transform_0, window_bounds = array<i64: 128, 32>}, {pipeline_mode = #tpu.pipeline_mode<synchronous>, transform_indices = @transform_1, window_bounds = array<i64: 160, 128>}, {pipeline_mode = #tpu.pipeline_mode<synchronous>, transform_indices = @transform_2, window_bounds = array<i64: 1, 128>}, {pipeline_mode = #tpu.pipeline_mode<synchronous>, transform_indices = @transform_3, window_bounds = array<i64: 16, 128>}, {pipeline_mode = #tpu.pipeline_mode<synchronous>, transform_indices = @transform_4, window_bounds = array<i64: 128, 128>}, {pipeline_mode = #tpu.pipeline_mode<synchronous>, transform_indices = @transform_5, window_bounds = array<i64: 1, 128>}, {transform_indices = @transform_6, window_bounds = array<i64: 8, 128>}]} {
    %c0 = arith.constant 0 : index
    %c0_0 = arith.constant 0 : index
    %0 = vector.load %arg1[%c0, %c0_0] : memref<128x32xbf16, #tpu.memory_space<vmem>>, vector<128x32xbf16>
    %1 = vector.extract_strided_slice %0 {offsets = [1, 0], sizes = [127, 32], strides = [1, 1]} : vector<128x32xbf16> to vector<127x32xbf16>
    %2 = vector.extract_strided_slice %0 {offsets = [0, 0], sizes = [1, 32], strides = [1, 1]} : vector<128x32xbf16> to vector<1x32xbf16>
    %3 = tpu.concatenate %1, %2 in 0 : vector<127x32xbf16>, vector<1x32xbf16> -> vector<128x32xbf16>
    %4 = vector.extract_strided_slice %0 {offsets = [2, 0], sizes = [126, 32], strides = [1, 1]} : vector<128x32xbf16> to vector<126x32xbf16>
    %5 = vector.extract_strided_slice %0 {offsets = [0, 0], sizes = [2, 32], strides = [1, 1]} : vector<128x32xbf16> to vector<2x32xbf16>
    %6 = tpu.concatenate %4, %5 in 0 : vector<126x32xbf16>, vector<2x32xbf16> -> vector<128x32xbf16>
    %7 = vector.extract_strided_slice %0 {offsets = [3, 0], sizes = [125, 32], strides = [1, 1]} : vector<128x32xbf16> to vector<125x32xbf16>
    %8 = vector.extract_strided_slice %0 {offsets = [0, 0], sizes = [3, 32], strides = [1, 1]} : vector<128x32xbf16> to vector<3x32xbf16>
    %9 = tpu.concatenate %7, %8 in 0 : vector<125x32xbf16>, vector<3x32xbf16> -> vector<128x32xbf16>
    %10 = vector.extract_strided_slice %0 {offsets = [4, 0], sizes = [124, 32], strides = [1, 1]} : vector<128x32xbf16> to vector<124x32xbf16>
    %11 = vector.extract_strided_slice %0 {offsets = [0, 0], sizes = [4, 32], strides = [1, 1]} : vector<128x32xbf16> to vector<4x32xbf16>
    %12 = tpu.concatenate %10, %11 in 0 : vector<124x32xbf16>, vector<4x32xbf16> -> vector<128x32xbf16>
    %13 = tpu.concatenate %0, %3, %6, %9, %12 in 1 : vector<128x32xbf16>, vector<128x32xbf16>, vector<128x32xbf16>, vector<128x32xbf16>, vector<128x32xbf16> -> vector<128x160xbf16>
    %c0_1 = arith.constant 0 : index
    %c0_2 = arith.constant 0 : index
    %14 = vector.load %arg2[%c0_1, %c0_2] : memref<160x128xbf16, #tpu.memory_space<vmem>>, vector<160x128xbf16>
    %cst = arith.constant dense<0.000000e+00> : vector<128x128xf32>
    %15 = tpu.matmul %13, %14, %cst {dimension_numbers = #tpu.dot_dimension_numbers<[1], [0], [0], [1], [0, 0, 1, 1], [], []>} : vector<128x160xbf16>, vector<160x128xbf16>, vector<128x128xf32> -> vector<128x128xf32>
    %c0_3 = arith.constant 0 : index
    %c0_4 = arith.constant 0 : index
    %16 = vector.load %arg3[%c0_3, %c0_4] : memref<1x128xf32, #tpu.memory_space<vmem>>, vector<1x128xf32>
    %17 = vector.broadcast %16 : vector<1x128xf32> to vector<128x128xf32>
    %18 = arith.addf %15, %17 : vector<128x128xf32>
    %19 = vector.shape_cast %18 : vector<128x128xf32> to vector<8x16x128xf32>
    %c0_5 = arith.constant 0 : index
    %c0_6 = arith.constant 0 : index
    %20 = vector.load %arg4[%c0_5, %c0_6] : memref<16x128xf32, #tpu.memory_space<vmem>>, vector<16x128xf32>
    %21 = vector.shape_cast %20 : vector<16x128xf32> to vector<1x16x128xf32>
    %22 = vector.broadcast %21 : vector<1x16x128xf32> to vector<8x16x128xf32>
    %23 = arith.mulf %19, %22 : vector<8x16x128xf32>
    %cst_7 = arith.constant 0.000000e+00 : f32
    %24 = vector.broadcast %cst_7 : f32 to vector<8x16x128xf32>
    %25 = arith.maximumf %23, %24 : vector<8x16x128xf32>
    %cst_8 = arith.constant dense<0xFF800000> : vector<8x128xf32>
    %26 = vector.multi_reduction <maximumf>, %25, %cst_8 [1] : vector<8x16x128xf32> to vector<8x128xf32>
    %c0_9 = arith.constant 0 : index
    %c0_10 = arith.constant 0 : index
    %27 = vector.load %arg5[%c0_9, %c0_10] : memref<128x128xf32, #tpu.memory_space<vmem>>, vector<128x128xf32>
    %cst_11 = arith.constant dense<0.000000e+00> : vector<8x128xf32>
    %28 = tpu.matmul %26, %27, %cst_11 {dimension_numbers = #tpu.dot_dimension_numbers<[1], [0], [0], [1], [0, 0, 1, 1], [], []>} : vector<8x128xf32>, vector<128x128xf32>, vector<8x128xf32> -> vector<8x128xf32>
    %c0_12 = arith.constant 0 : index
    %c0_13 = arith.constant 0 : index
    %29 = vector.load %arg6[%c0_12, %c0_13] : memref<1x128xf32, #tpu.memory_space<vmem>>, vector<1x128xf32>
    %30 = vector.broadcast %29 : vector<1x128xf32> to vector<8x128xf32>
    %31 = arith.addf %28, %30 : vector<8x128xf32>
    %c0_14 = arith.constant 0 : index
    %c0_15 = arith.constant 0 : index
    %32 = vector.load %arg7[%c0_14, %c0_15] : memref<8x128xf32, #tpu.memory_space<vmem>>, vector<8x128xf32>
    tpu.vector_store %arg7[%c0_14, %c0_15], %31 {strides = array<i32>} : memref<8x128xf32, #tpu.memory_space<vmem>>, vector<8x128xf32>,
    return
  }
  func.func @transform_0(%arg0: i32) -> (i32, i32) {
    %c0_i32 = arith.constant 0 : i32
    %c0_i32_0 = arith.constant 0 : i32
    return %arg0, %c0_i32 : i32, i32
  }
  func.func @transform_1(%arg0: i32) -> (i32, i32) {
    %c0_i32 = arith.constant 0 : i32
    %c0_i32_0 = arith.constant 0 : i32
    %c0_i32_1 = arith.constant 0 : i32
    return %c0_i32, %c0_i32_0 : i32, i32
  }
  func.func @transform_2(%arg0: i32) -> (i32, i32) {
    %c0_i32 = arith.constant 0 : i32
    %c0_i32_0 = arith.constant 0 : i32
    %c0_i32_1 = arith.constant 0 : i32
    return %c0_i32, %c0_i32_0 : i32, i32
  }
  func.func @transform_3(%arg0: i32) -> (i32, i32) {
    %c0_i32 = arith.constant 0 : i32
    %c0_i32_0 = arith.constant 0 : i32
    %c0_i32_1 = arith.constant 0 : i32
    return %c0_i32, %c0_i32_0 : i32, i32
  }
  func.func @transform_4(%arg0: i32) -> (i32, i32) {
    %c0_i32 = arith.constant 0 : i32
    %c0_i32_0 = arith.constant 0 : i32
    %c0_i32_1 = arith.constant 0 : i32
    return %c0_i32, %c0_i32_0 : i32, i32
  }
  func.func @transform_5(%arg0: i32) -> (i32, i32) {
    %c0_i32 = arith.constant 0 : i32
    %c0_i32_0 = arith.constant 0 : i32
    %c0_i32_1 = arith.constant 0 : i32
    return %c0_i32, %c0_i32_0 : i32, i32
  }
  func.func @transform_6(%arg0: i32) -> (i32, i32) {
    %c0_i32 = arith.constant 0 : i32
    %c0_i32_0 = arith.constant 0 : i32
    return %arg0, %c0_i32 : i32, i32
  }
}

</mosaic_0001>

<llo_original>
// kernel: cnn_forward.1
$region0: #{cnn_forward.1}
  #allocation0 [shape = 'u32[]', space=smem, size = 0x4, offset = 0x4, fixed_abs, tag = 'smem constant byte address 0x4 - core index']
  #allocation1 [shape = 'u32[144,128]{1,0:T(1,128)}', space=vmem, size = 0x12000, scoped, tag = 'internal scratch']
  %s0 = inlined_call_operand.vmem [shape: bf16[128,32], index: 0, kind: input, shape index: {}]
  %s1 = inlined_call_operand.vmem [shape: bf16[160,128], index: 1, kind: input, shape index: {}]
  %s2 = inlined_call_operand.vmem [shape: f32[1,128], index: 2, kind: input, shape index: {}]
  %s3 = inlined_call_operand.vmem [shape: f32[16,128], index: 3, kind: input, shape index: {}]
  %s4 = inlined_call_operand.vmem [shape: f32[128,128], index: 4, kind: input, shape index: {}]
  %s5 = inlined_call_operand.vmem [shape: f32[1,128], index: 5, kind: input, shape index: {}]
  %s6 = inlined_call_operand.vmem [shape: f32[8,128], index: 6, kind: output, shape index: {}]
  %s7 = sld [smem:[#allocation0]]
  $region34: #{cnn_forward.1} parent=0
    _
  %s9 = ssub.s32 1, %s7
  %s10 = scalar_select 0, %s9, %s7
  // Predicated region
  $region2: #{cnn_forward.1} parent=0 // pred_check
    _
  $region3: #{cnn_forward.1} parent=0 // pred_check_branch
    %12 = sbr.rel (0) target = $region5
  $region4: #{cnn_forward.1} parent=0 // pred_region
    _
  $region5: #{cnn_forward.1} parent=0 // pred_fallthru
    _
  // Predicated region
  $region6: #{cnn_forward.1} parent=0 // pred_check
    _
  $region7: #{cnn_forward.1} parent=0 // pred_check_branch
    %14 = sbr.rel (0) target = $region9
  $region8: #{cnn_forward.1} parent=0 // pred_region
    _
  $region9: #{cnn_forward.1} parent=0 // pred_fallthru
    _
  // Predicated region
  $region10: #{cnn_forward.1} parent=0 // pred_check
    _
  $region11: #{cnn_forward.1} parent=0 // pred_check_branch
    %16 = sbr.rel (0) target = $region13
  $region12: #{cnn_forward.1} parent=0 // pred_region
    _
  $region13: #{cnn_forward.1} parent=0 // pred_fallthru
    _
  // Predicated region
  $region14: #{cnn_forward.1} parent=0 // pred_check
    _
  $region15: #{cnn_forward.1} parent=0 // pred_check_branch
    %18 = sbr.rel (0) target = $region17
  $region16: #{cnn_forward.1} parent=0 // pred_region
    _
  $region17: #{cnn_forward.1} parent=0 // pred_fallthru
    _
  // Predicated region
  $region18: #{cnn_forward.1} parent=0 // pred_check
    _
  $region19: #{cnn_forward.1} parent=0 // pred_check_branch
    %20 = sbr.rel (0) target = $region21
  $region20: #{cnn_forward.1} parent=0 // pred_region
    _
  $region21: #{cnn_forward.1} parent=0 // pred_fallthru
    _
  // Predicated region
  $region22: #{cnn_forward.1} parent=0 // pred_check
    _
  $region23: #{cnn_forward.1} parent=0 // pred_check_branch
    %22 = sbr.rel (0) target = $region25
  $region24: #{cnn_forward.1} parent=0 // pred_region
    _
  $region25: #{cnn_forward.1} parent=0 // pred_fallthru
    _
  %v24 = vld [vmem:[%s0] sm:$0xf]
  %v25 = vld [vmem:[%s0 + $0x4] sm:$0xf]
  %v26 = vld [vmem:[%s0 + $0x8] sm:$0xf]
  %v27 = vld [vmem:[%s0 + $0xc] sm:$0xf]
  %v28 = vld [vmem:[%s0 + $0x10] sm:$0xf]
  %v29 = vld [vmem:[%s0 + $0x14] sm:$0xf]
  %v30 = vld [vmem:[%s0 + $0x18] sm:$0xf]
  %v31 = vld [vmem:[%s0 + $0x1c] sm:$0xf]
  %v32 = vld [vmem:[%s0 + $0x20] sm:$0xf]
  %v33 = vld [vmem:[%s0 + $0x24] sm:$0xf]
  %v34 = vld [vmem:[%s0 + $0x28] sm:$0xf]
  %v35 = vld [vmem:[%s0 + $0x2c] sm:$0xf]
  %v36 = vld [vmem:[%s0 + $0x30] sm:$0xf]
  %v37 = vld [vmem:[%s0 + $0x34] sm:$0xf]
  %v38 = vld [vmem:[%s0 + $0x38] sm:$0xf]
  %v39 = vld [vmem:[%s0 + $0x3c] sm:$0xf]
  %v56 = vunpack.c.l.b16 %v24
  %v57 = vunpack.c.l.b16 %v25
  %v58 = vunpack.c.l.b16 %v26
  %v59 = vunpack.c.l.b16 %v27
  %v60 = vunpack.c.l.b16 %v28
  %v61 = vunpack.c.l.b16 %v29
  %v62 = vunpack.c.l.b16 %v30
  %v63 = vunpack.c.l.b16 %v31
  %v64 = vunpack.c.l.b16 %v32
  %v65 = vunpack.c.l.b16 %v33
  %v66 = vunpack.c.l.b16 %v34
  %v67 = vunpack.c.l.b16 %v35
  %v68 = vunpack.c.l.b16 %v36
  %v69 = vunpack.c.l.b16 %v37
  %v70 = vunpack.c.l.b16 %v38
  %v71 = vunpack.c.l.b16 %v39
  %v72 = vpack.c.b16 %v57, %v56
  %v73 = vpack.c.b16 %v59, %v58
  %v74 = vpack.c.b16 %v61, %v60
  %v75 = vpack.c.b16 %v63, %v62
  %v76 = vpack.c.b16 %v65, %v64
  %v77 = vpack.c.b16 %v67, %v66
  %v78 = vpack.c.b16 %v69, %v68
  %v79 = vpack.c.b16 %v71, %v70
  %vm80 = vsmask.f32 7424
  %v82 = vshrl.u32 %v72, 16
  %v84 = vshll.u32 %v72, 16
  %v86 = vrot.slane %v84, 1
  %v87 = vor.u32 %v82, %v86
  %v89 = vshll.u32 %v73, 16
  %v91 = vrot.slane %v89, 1
  %v92 = vsel %vm80, %v87, %v91
  %v93 = vshrl.u32 %v73, 16
  %v95 = vor.u32 %v93, %v91
  %v97 = vshll.u32 %v74, 16
  %v99 = vrot.slane %v97, 1
  %v100 = vsel %vm80, %v95, %v99
  %v101 = vshrl.u32 %v74, 16
  %v103 = vor.u32 %v101, %v99
  %v105 = vshll.u32 %v75, 16
  %v107 = vrot.slane %v105, 1
  %v108 = vsel %vm80, %v103, %v107
  %v109 = vshrl.u32 %v75, 16
  %v111 = vor.u32 %v109, %v107
  %v113 = vshll.u32 %v76, 16
  %v115 = vrot.slane %v113, 1
  %v116 = vsel %vm80, %v111, %v115
  %v117 = vshrl.u32 %v76, 16
  %v119 = vor.u32 %v117, %v115
  %v121 = vshll.u32 %v77, 16
  %v123 = vrot.slane %v121, 1
  %v124 = vsel %vm80, %v119, %v123
  %v125 = vshrl.u32 %v77, 16
  %v127 = vor.u32 %v125, %v123
  %v129 = vshll.u32 %v78, 16
  %v131 = vrot.slane %v129, 1
  %v132 = vsel %vm80, %v127, %v131
  %v133 = vshrl.u32 %v78, 16
  %v135 = vor.u32 %v133, %v131
  %v137 = vshll.u32 %v79, 16
  %v139 = vrot.slane %v137, 1
  %v140 = vsel %vm80, %v135, %v139
  %v141 = vshrl.u32 %v79, 16
  %v143 = vor.u32 %v141, %v139
  %v145 = vpack.c.b16 %v56, %v56
  %v147 = vshll.u32 %v145, 16
  %v149 = vrot.slane %v147, 1
  %vm151 = vcmask 1047552
  %vm152 = vmand %vm151, %vm80
  %v153 = vsel %vm152, %v143, %v149
  %vm154 = vcmask 1046528
  %v155 = vrot.slane %v72, 1
  %v156 = vrot.slane %v73, 1
  %v157 = vsel %vm154, %v155, %v156
  %v158 = vrot.slane %v74, 1
  %v159 = vsel %vm154, %v156, %v158
  %v160 = vrot.slane %v75, 1
  %v161 = vsel %vm154, %v158, %v160
  %v162 = vrot.slane %v76, 1
  %v163 = vsel %vm154, %v160, %v162
  %v164 = vrot.slane %v77, 1
  %v165 = vsel %vm154, %v162, %v164
  %v166 = vrot.slane %v78, 1
  %v167 = vsel %vm154, %v164, %v166
  %v168 = vrot.slane %v79, 1
  %v169 = vsel %vm154, %v166, %v168
  %v170 = vrot.slane %v145, 1
  %vm171 = vcmask 1046528
  %v174 = vsel %vm171, %v168, %v170
  %vm175 = vsmask.f32 6400
  %v176 = vrot.slane %v82, 1
  %v177 = vrot.slane %v84, 2
  %v178 = vor.u32 %v176, %v177
  %v179 = vrot.slane %v93, 1
  %v180 = vrot.slane %v89, 2
  %v181 = vor.u32 %v179, %v180
  %v182 = vsel %vm175, %v178, %v181
  %v183 = vrot.slane %v101, 1
  %v184 = vrot.slane %v97, 2
  %v185 = vor.u32 %v183, %v184
  %v186 = vsel %vm175, %v181, %v185
  %v187 = vrot.slane %v109, 1
  %v188 = vrot.slane %v105, 2
  %v189 = vor.u32 %v187, %v188
  %v190 = vsel %vm175, %v185, %v189
  %v191 = vrot.slane %v117, 1
  %v192 = vrot.slane %v113, 2
  %v193 = vor.u32 %v191, %v192
  %v194 = vsel %vm175, %v189, %v193
  %v195 = vrot.slane %v125, 1
  %v196 = vrot.slane %v121, 2
  %v197 = vor.u32 %v195, %v196
  %v198 = vsel %vm175, %v193, %v197
  %v199 = vrot.slane %v133, 1
  %v200 = vrot.slane %v129, 2
  %v201 = vor.u32 %v199, %v200
  %v202 = vsel %vm175, %v197, %v201
  %v203 = vrot.slane %v141, 1
  %v204 = vrot.slane %v137, 2
  %v205 = vor.u32 %v203, %v204
  %v206 = vsel %vm175, %v201, %v205
  %v208 = vshrl.u32 %v145, 16
  %v210 = vrot.slane %v208, 1
  %v211 = vrot.slane %v147, 2
  %v212 = vor.u32 %v210, %v211
  %vm214 = vmand %vm154, %vm175
  %v215 = vsel %vm214, %v205, %v212
  %vm216 = vcmask 1045504
  %v217 = vrot.slane %v72, 2
  %v218 = vrot.slane %v73, 2
  %v219 = vsel %vm216, %v217, %v218
  %v220 = vrot.slane %v74, 2
  %v221 = vsel %vm216, %v218, %v220
  %v222 = vrot.slane %v75, 2
  %v223 = vsel %vm216, %v220, %v222
  %v224 = vrot.slane %v76, 2
  %v225 = vsel %vm216, %v222, %v224
  %v226 = vrot.slane %v77, 2
  %v227 = vsel %vm216, %v224, %v226
  %v228 = vrot.slane %v78, 2
  %v229 = vsel %vm216, %v226, %v228
  %v230 = vrot.slane %v79, 2
  %v231 = vsel %vm216, %v228, %v230
  %v232 = vrot.slane %v145, 2
  %vm233 = vcmask 1045504
  %v236 = vsel %vm233, %v230, %v232
  %238 = vrot.lane.b32.xlu0 %v92, 32
  %v239 = vpop.permute.xlu0 %238
  %240 = vrot.lane.b32.xlu0 %v100, 32
  %v241 = vpop.permute.xlu0 %240
  %242 = vrot.lane.b32.xlu0 %v108, 32
  %v243 = vpop.permute.xlu0 %242
  %244 = vrot.lane.b32.xlu0 %v116, 32
  %v245 = vpop.permute.xlu0 %244
  %246 = vrot.lane.b32.xlu0 %v124, 32
  %v247 = vpop.permute.xlu0 %246
  %248 = vrot.lane.b32.xlu0 %v132, 32
  %v249 = vpop.permute.xlu0 %248
  %250 = vrot.lane.b32.xlu0 %v140, 32
  %v251 = vpop.permute.xlu0 %250
  %252 = vrot.lane.b32.xlu0 %v153, 32
  %v253 = vpop.permute.xlu0 %252
  %255 = vrot.lane.b32.xlu0 %v157, 64
  %v256 = vpop.permute.xlu0 %255
  %257 = vrot.lane.b32.xlu0 %v159, 64
  %v258 = vpop.permute.xlu0 %257
  %259 = vrot.lane.b32.xlu0 %v161, 64
  %v260 = vpop.permute.xlu0 %259
  %261 = vrot.lane.b32.xlu0 %v163, 64
  %v262 = vpop.permute.xlu0 %261
  %263 = vrot.lane.b32.xlu0 %v165, 64
  %v264 = vpop.permute.xlu0 %263
  %265 = vrot.lane.b32.xlu0 %v167, 64
  %v266 = vpop.permute.xlu0 %265
  %267 = vrot.lane.b32.xlu0 %v169, 64
  %v268 = vpop.permute.xlu0 %267
  %269 = vrot.lane.b32.xlu0 %v174, 64
  %v270 = vpop.permute.xlu0 %269
  %272 = vrot.lane.b32.xlu0 %v182, 96
  %v273 = vpop.permute.xlu0 %272
  %274 = vrot.lane.b32.xlu0 %v186, 96
  %v275 = vpop.permute.xlu0 %274
  %276 = vrot.lane.b32.xlu0 %v190, 96
  %v277 = vpop.permute.xlu0 %276
  %278 = vrot.lane.b32.xlu0 %v194, 96
  %v279 = vpop.permute.xlu0 %278
  %280 = vrot.lane.b32.xlu0 %v198, 96
  %v281 = vpop.permute.xlu0 %280
  %282 = vrot.lane.b32.xlu0 %v202, 96
  %v283 = vpop.permute.xlu0 %282
  %284 = vrot.lane.b32.xlu0 %v206, 96
  %v285 = vpop.permute.xlu0 %284
  %286 = vrot.lane.b32.xlu0 %v215, 96
  %v287 = vpop.permute.xlu0 %286
  %vm288 = vcmask 261120
  %v290 = vsel %vm288, %v72, %v239
  %v292 = vsel %vm288, %v73, %v241
  %v294 = vsel %vm288, %v74, %v243
  %v296 = vsel %vm288, %v75, %v245
  %v298 = vsel %vm288, %v76, %v247
  %v300 = vsel %vm288, %v77, %v249
  %v302 = vsel %vm288, %v78, %v251
  %v304 = vsel %vm288, %v79, %v253
  %vm305 = vcmask 523264
  %v307 = vsel %vm305, %v290, %v256
  %v309 = vsel %vm305, %v292, %v258
  %v311 = vsel %vm305, %v294, %v260
  %v313 = vsel %vm305, %v296, %v262
  %v315 = vsel %vm305, %v298, %v264
  %v317 = vsel %vm305, %v300, %v266
  %v319 = vsel %vm305, %v302, %v268
  %v321 = vsel %vm305, %v304, %v270
  %vm322 = vcmask 785408
  %v324 = vsel %vm322, %v307, %v273
  %v327 = vsel %vm322, %v309, %v275
  %v330 = vsel %vm322, %v311, %v277
  %v333 = vsel %vm322, %v313, %v279
  %v336 = vsel %vm322, %v315, %v281
  %v339 = vsel %vm322, %v317, %v283
  %v342 = vsel %vm322, %v319, %v285
  %v345 = vsel %vm322, %v321, %v287
  %v347 = vld [vmem:[%s1] sm:$0xf]
  %v348 = vld [vmem:[%s1 + $0x4] sm:$0xf]
  %v349 = vld [vmem:[%s1 + $0x8] sm:$0xf]
  %v350 = vld [vmem:[%s1 + $0xc] sm:$0xf]
  %v351 = vld [vmem:[%s1 + $0x10] sm:$0xf]
  %v352 = vld [vmem:[%s1 + $0x14] sm:$0xf]
  %v353 = vld [vmem:[%s1 + $0x18] sm:$0xf]
  %v354 = vld [vmem:[%s1 + $0x1c] sm:$0xf]
  %v355 = vld [vmem:[%s1 + $0x20] sm:$0xf]
  %v356 = vld [vmem:[%s1 + $0x24] sm:$0xf]
  %v357 = vld [vmem:[%s1 + $0x28] sm:$0xf]
  %v358 = vld [vmem:[%s1 + $0x2c] sm:$0xf]
  %v359 = vld [vmem:[%s1 + $0x30] sm:$0xf]
  %v360 = vld [vmem:[%s1 + $0x34] sm:$0xf]
  %v361 = vld [vmem:[%s1 + $0x38] sm:$0xf]
  %v362 = vld [vmem:[%s1 + $0x3c] sm:$0xf]
  %v363 = vld [vmem:[%s1 + $0x40] sm:$0xf]
  %v364 = vld [vmem:[%s1 + $0x44] sm:$0xf]
  %v365 = vld [vmem:[%s1 + $0x48] sm:$0xf]
  %v366 = vld [vmem:[%s1 + $0x4c] sm:$0xf]
  %v367 = vld [vmem:[%s2] sm:$0x1]
  %v369 = vlaneseq
  %v370 = vshrl.u32 %v369, 7
  %v371 = vsub.s32 0, %v370
  %v372 = vrot.slane %v367, %v371
  %v394 = vunpack.c.l.b16 %v347
  %v395 = vunpack.c.l.b16 %v348
  %v396 = vunpack.c.l.b16 %v349
  %v397 = vunpack.c.l.b16 %v350
  %v398 = vunpack.c.l.b16 %v351
  %v399 = vunpack.c.l.b16 %v352
  %v400 = vunpack.c.l.b16 %v353
  %v401 = vunpack.c.l.b16 %v354
  %v402 = vunpack.c.l.b16 %v355
  %v403 = vunpack.c.l.b16 %v356
  %v404 = vunpack.c.l.b16 %v357
  %v405 = vunpack.c.l.b16 %v358
  %v406 = vunpack.c.l.b16 %v359
  %v407 = vunpack.c.l.b16 %v360
  %v408 = vunpack.c.l.b16 %v361
  %v409 = vunpack.c.l.b16 %v362
  %v410 = vunpack.c.l.b16 %v363
  %v411 = vunpack.c.l.b16 %v364
  %v412 = vunpack.c.l.b16 %v365
  %v413 = vunpack.c.l.b16 %v366
  %v414 = vpack.c.b16 %v395, %v394
  %v415 = vpack.c.b16 %v397, %v396
  %v416 = vpack.c.b16 %v399, %v398
  %v417 = vpack.c.b16 %v401, %v400
  %v418 = vpack.c.b16 %v403, %v402
  %v419 = vpack.c.b16 %v405, %v404
  %v420 = vpack.c.b16 %v407, %v406
  %v421 = vpack.c.b16 %v409, %v408
  %v422 = vpack.c.b16 %v411, %v410
  %v423 = vpack.c.b16 %v413, %v412
  %v435 = vsel %vm288, %v219, 0
  %v438 = vsel %vm288, %v221, 0
  %v441 = vsel %vm288, %v223, 0
  %v444 = vsel %vm288, %v225, 0
  %v447 = vsel %vm288, %v227, 0
  %v450 = vsel %vm288, %v229, 0
  %v453 = vsel %vm288, %v231, 0
  %v455 = vsel %vm288, %v236, 0
  %457 = vmatprep.subr.bf16.mxu0 0
  %458 = vmatpush1.bf16.msra.mxu0 %v414
  %459 = vmatprep.subr.bf16.mxu0 0
  %460 = vmatpush1.bf16.msra.mxu0 %v415
  %461 = vmatprep.subr.bf16.mxu0 0
  %462 = vmatpush1.bf16.msra.mxu0 %v416
  %463 = vmatprep.subr.bf16.mxu0 0
  %464 = vmatpush1.bf16.msra.mxu0 %v417
  %465 = vmatprep.subr.bf16.mxu0 0
  %466 = vmatpush1.bf16.msra.mxu0 %v418
  %467 = vmatprep.subr.bf16.mxu0 0
  %468 = vmatpush1.bf16.msra.mxu0 %v419
  %469 = vmatprep.subr.bf16.mxu0 0
  %470 = vmatpush1.bf16.msra.mxu0 %v420
  %471 = vmatprep.subr.bf16.mxu0 0
  %472 = vmatpush1.bf16.msra.mxu0 %v421
  %473 = vmatprep.subr.bf16.mxu0 0
  %474 = vmatpush1.bf16.msra.mxu0 %v422
  %475 = vmatprep.subr.bf16.mxu0 0
  %476 = vmatpush1.bf16.msra.mxu0 %v423
  %477 = vmatprep.subr.bf16.mxu0 0
  %478 = vmatpush1.bf16.msra.mxu0 0
  %479 = vmatprep.subr.bf16.mxu0 0
  %480 = vmatpush1.bf16.msra.mxu0 0
  %481 = vmatprep.subr.bf16.mxu0 0
  %482 = vmatpush1.bf16.msra.mxu0 0
  %483 = vmatprep.subr.bf16.mxu0 0
  %484 = vmatpush1.bf16.msra.mxu0 0
  %485 = vmatprep.subr.bf16.mxu0 0
  %486 = vmatpush1.bf16.msra.mxu0 0
  %487 = vmatprep.subr.bf16.mxu0 0
  %488 = vmatpush1.bf16.msra.mxu0 0
  %489 = vmatprep.mubr.bf16.mxu0 %v435
  %490 = vmatmul.mubr.bf16.gmra.mrb[0].mxu0 %v324
  %v491 = vpop.f32.mrb[0].mxu0
  %v492 = vadd.f32 %v372, %v491
  %v493 = vpop.f32.mrb[0].mxu0
  %v494 = vpop.f32.mrb[0].mxu0
  %v495 = vadd.f32 %v372, %v494
  %v496 = vpop.f32.mrb[0].mxu0
  %497 = vmatprep.mubr.bf16.mxu0 %v438
  %498 = vmatmul.mubr.bf16.gmra.mrb[0].mxu0 %v327
  %v499 = vpop.f32.mrb[0].mxu0
  %v500 = vadd.f32 %v372, %v499
  %v501 = vpop.f32.mrb[0].mxu0
  %v502 = vpop.f32.mrb[0].mxu0
  %v503 = vadd.f32 %v372, %v502
  %v504 = vpop.f32.mrb[0].mxu0
  %505 = vmatprep.mubr.bf16.mxu0 %v441
  %506 = vmatmul.mubr.bf16.gmra.mrb[0].mxu0 %v330
  %v507 = vpop.f32.mrb[0].mxu0
  %v508 = vadd.f32 %v372, %v507
  %v509 = vpop.f32.mrb[0].mxu0
  %v510 = vpop.f32.mrb[0].mxu0
  %v511 = vadd.f32 %v372, %v510
  %v512 = vpop.f32.mrb[0].mxu0
  %513 = vmatprep.mubr.bf16.mxu0 %v444
  %514 = vmatmul.mubr.bf16.gmra.mrb[0].mxu0 %v333
  %v515 = vpop.f32.mrb[0].mxu0
  %v516 = vadd.f32 %v372, %v515
  %v517 = vpop.f32.mrb[0].mxu0
  %v518 = vpop.f32.mrb[0].mxu0
  %v519 = vadd.f32 %v372, %v518
  %v520 = vpop.f32.mrb[0].mxu0
  %521 = vmatprep.mubr.bf16.mxu0 %v447
  %522 = vmatmul.mubr.bf16.gmra.mrb[0].mxu0 %v336
  %v523 = vpop.f32.mrb[0].mxu0
  %v524 = vadd.f32 %v372, %v523
  %v525 = vpop.f32.mrb[0].mxu0
  %v526 = vpop.f32.mrb[0].mxu0
  %v527 = vadd.f32 %v372, %v526
  %v528 = vpop.f32.mrb[0].mxu0
  %529 = vmatprep.mubr.bf16.mxu0 %v450
  %530 = vmatmul.mubr.bf16.gmra.mrb[0].mxu0 %v339
  %v531 = vpop.f32.mrb[0].mxu0
  %v532 = vadd.f32 %v372, %v531
  %v533 = vpop.f32.mrb[0].mxu0
  %v534 = vpop.f32.mrb[0].mxu0
  %v535 = vadd.f32 %v372, %v534
  %v536 = vpop.f32.mrb[0].mxu0
  %537 = vmatprep.mubr.bf16.mxu0 %v453
  %538 = vmatmul.mubr.bf16.gmra.mrb[0].mxu0 %v342
  %v539 = vpop.f32.mrb[0].mxu0
  %v540 = vadd.f32 %v372, %v539
  %v541 = vpop.f32.mrb[0].mxu0
  %v542 = vpop.f32.mrb[0].mxu0
  %v543 = vadd.f32 %v372, %v542
  %v544 = vpop.f32.mrb[0].mxu0
  %545 = vmatprep.mubr.bf16.mxu0 %v455
  %546 = vmatmul.mubr.bf16.gmra.mrb[0].mxu0 %v345
  %v547 = vpop.f32.mrb[0].mxu0
  %v548 = vadd.f32 %v372, %v547
  %v549 = vpop.f32.mrb[0].mxu0
  %v550 = vpop.f32.mrb[0].mxu0
  %v551 = vadd.f32 %v372, %v550
  %v552 = vpop.f32.mrb[0].mxu0
  %553 = vdwg.mxu0
  %v554 = vld [vmem:[%s3] sm:$0xff]
  %v555 = vld [vmem:[%s3 + $0x8] sm:$0xff]
  %v556 = vmul.f32 %v492, %v554
  %v557 = vmul.f32 %v495, %v555
  %v558 = vmul.f32 %v500, %v554
  %v559 = vmul.f32 %v503, %v555
  %v560 = vmul.f32 %v508, %v554
  %v561 = vmul.f32 %v511, %v555
  %v562 = vmul.f32 %v516, %v554
  %v563 = vmul.f32 %v519, %v555
  %v564 = vmul.f32 %v524, %v554
  %v565 = vmul.f32 %v527, %v555
  %v566 = vmul.f32 %v532, %v554
  %v567 = vmul.f32 %v535, %v555
  %v568 = vmul.f32 %v540, %v554
  %v569 = vmul.f32 %v543, %v555
  %v570 = vmul.f32 %v548, %v554
  %v571 = vmul.f32 %v551, %v555
  %v572 = vmax.f32 %v556, 0.0
  %v573 = vmax.f32 %v557, 0.0
  %v574 = vmax.f32 %v558, 0.0
  %v575 = vmax.f32 %v559, 0.0
  %v576 = vmax.f32 %v560, 0.0
  %v577 = vmax.f32 %v561, 0.0
  %v578 = vmax.f32 %v562, 0.0
  %v579 = vmax.f32 %v563, 0.0
  %v580 = vmax.f32 %v564, 0.0
  %v581 = vmax.f32 %v565, 0.0
  %v582 = vmax.f32 %v566, 0.0
  %v583 = vmax.f32 %v567, 0.0
  %v584 = vmax.f32 %v568, 0.0
  %v585 = vmax.f32 %v569, 0.0
  %v586 = vmax.f32 %v570, 0.0
  %v587 = vmax.f32 %v571, 0.0
  %v588 = vmax.f32 %v572, %v573
  %v589 = vrot.slane %v588, 4
  %v590 = vmax.f32 %v588, %v589
  %v591 = vrot.slane %v590, 2
  %v592 = vmax.f32 %v590, %v591
  %v593 = vrot.slane %v592, 1
  %v594 = vmax.f32 %v592, %v593
  %v595 = vmax.f32 %v574, %v575
  %v596 = vrot.slane %v595, 4
  %v597 = vmax.f32 %v595, %v596
  %v598 = vrot.slane %v597, 2
  %v599 = vmax.f32 %v597, %v598
  %v600 = vrot.slane %v599, 1
  %v601 = vmax.f32 %v599, %v600
  %v602 = vmax.f32 %v576, %v577
  %v603 = vrot.slane %v602, 4
  %v604 = vmax.f32 %v602, %v603
  %v605 = vrot.slane %v604, 2
  %v606 = vmax.f32 %v604, %v605
  %v607 = vrot.slane %v606, 1
  %v608 = vmax.f32 %v606, %v607
  %v609 = vmax.f32 %v578, %v579
  %v610 = vrot.slane %v609, 4
  %v611 = vmax.f32 %v609, %v610
  %v612 = vrot.slane %v611, 2
  %v613 = vmax.f32 %v611, %v612
  %v614 = vrot.slane %v613, 1
  %v615 = vmax.f32 %v613, %v614
  %v616 = vmax.f32 %v580, %v581
  %v617 = vrot.slane %v616, 4
  %v618 = vmax.f32 %v616, %v617
  %v619 = vrot.slane %v618, 2
  %v620 = vmax.f32 %v618, %v619
  %v621 = vrot.slane %v620, 1
  %v622 = vmax.f32 %v620, %v621
  %v623 = vmax.f32 %v582, %v583
  %v624 = vrot.slane %v623, 4
  %v625 = vmax.f32 %v623, %v624
  %v626 = vrot.slane %v625, 2
  %v627 = vmax.f32 %v625, %v626
  %v628 = vrot.slane %v627, 1
  %v629 = vmax.f32 %v627, %v628
  %v630 = vmax.f32 %v584, %v585
  %v631 = vrot.slane %v630, 4
  %v632 = vmax.f32 %v630, %v631
  %v633 = vrot.slane %v632, 2
  %v634 = vmax.f32 %v632, %v633
  %v635 = vrot.slane %v634, 1
  %v636 = vmax.f32 %v634, %v635
  %v637 = vmax.f32 %v586, %v587
  %v638 = vrot.slane %v637, 4
  %v639 = vmax.f32 %v637, %v638
  %v640 = vrot.slane %v639, 2
  %v641 = vmax.f32 %v639, %v640
  %v642 = vrot.slane %v641, 1
  %v643 = vmax.f32 %v641, %v642
  %v644 = vld [vmem:[%s4] sm:$0xff]
  %v645 = vld [vmem:[%s4 + $0x8] sm:$0xff]
  %v646 = vld [vmem:[%s4 + $0x10] sm:$0xff]
  %v647 = vld [vmem:[%s4 + $0x18] sm:$0xff]
  %v648 = vld [vmem:[%s4 + $0x20] sm:$0xff]
  %v649 = vld [vmem:[%s4 + $0x28] sm:$0xff]
  %v650 = vld [vmem:[%s4 + $0x30] sm:$0xff]
  %v651 = vld [vmem:[%s4 + $0x38] sm:$0xff]
  %v652 = vld [vmem:[%s4 + $0x40] sm:$0xff]
  %v653 = vld [vmem:[%s4 + $0x48] sm:$0xff]
  %v654 = vld [vmem:[%s4 + $0x50] sm:$0xff]
  %v655 = vld [vmem:[%s4 + $0x58] sm:$0xff]
  %v656 = vld [vmem:[%s4 + $0x60] sm:$0xff]
  %v657 = vld [vmem:[%s4 + $0x68] sm:$0xff]
  %v658 = vld [vmem:[%s4 + $0x70] sm:$0xff]
  %v659 = vld [vmem:[%s4 + $0x78] sm:$0xff]
  %v660 = vld [vmem:[%s5] sm:$0x1]
  %v662 = vlaneseq
  %v663 = vshrl.u32 %v662, 7
  %v664 = vsub.s32 0, %v663
  %v665 = vrot.slane %v660, %v664
  %vm675 = vcmask 1041409
  %v676 = vsel %vm675, %v601, %v594
  %vm677 = vcmask 1042434
  %v678 = vsel %vm677, %v608, %v676
  %vm679 = vcmask 1043459
  %v680 = vsel %vm679, %v615, %v678
  %vm681 = vcmask 1044484
  %v682 = vsel %vm681, %v622, %v680
  %vm683 = vcmask 1045509
  %v684 = vsel %vm683, %v629, %v682
  %vm685 = vcmask 1046534
  %v686 = vsel %vm685, %v636, %v684
  %vm687 = vcmask 1047559
  %v688 = vsel %vm687, %v643, %v686
  %690 = vmatprep.subr.mxu0 0.0
  %691 = vmatpush1.msra.mxu0 %v644
  %692 = vmatprep.subr.mxu0 0.0
  %693 = vmatpush1.msra.mxu0 %v645
  %694 = vmatprep.subr.mxu0 0.0
  %695 = vmatpush1.msra.mxu0 %v646
  %696 = vmatprep.subr.mxu0 0.0
  %697 = vmatpush1.msra.mxu0 %v647
  %698 = vmatprep.subr.mxu0 0.0
  %699 = vmatpush1.msra.mxu0 %v648
  %700 = vmatprep.subr.mxu0 0.0
  %701 = vmatpush1.msra.mxu0 %v649
  %702 = vmatprep.subr.mxu0 0.0
  %703 = vmatpush1.msra.mxu0 %v650
  %704 = vmatprep.subr.mxu0 0.0
  %705 = vmatpush1.msra.mxu0 %v651
  %706 = vmatprep.subr.mxu0 0.0
  %707 = vmatpush1.msra.mxu0 %v652
  %708 = vmatprep.subr.mxu0 0.0
  %709 = vmatpush1.msra.mxu0 %v653
  %710 = vmatprep.subr.mxu0 0.0
  %711 = vmatpush1.msra.mxu0 %v654
  %712 = vmatprep.subr.mxu0 0.0
  %713 = vmatpush1.msra.mxu0 %v655
  %714 = vmatprep.subr.mxu0 0.0
  %715 = vmatpush1.msra.mxu0 %v656
  %716 = vmatprep.subr.mxu0 0.0
  %717 = vmatpush1.msra.mxu0 %v657
  %718 = vmatprep.subr.mxu0 0.0
  %719 = vmatpush1.msra.mxu0 %v658
  %720 = vmatprep.subr.mxu0 0.0
  %721 = vmatpush1.msra.mxu0 %v659
  %722 = vmatprep.subr.mxu0 0.0
  %723 = vmatpush1.msra.mxu0 0.0
  %724 = vmatprep.subr.mxu0 0.0
  %725 = vmatpush1.msra.mxu0 0.0
  %726 = vmatprep.subr.mxu0 0.0
  %727 = vmatpush1.msra.mxu0 0.0
  %728 = vmatprep.subr.mxu0 0.0
  %729 = vmatpush1.msra.mxu0 0.0
  %730 = vmatprep.subr.mxu0 0.0
  %731 = vmatpush1.msra.mxu0 0.0
  %732 = vmatprep.subr.mxu0 0.0
  %733 = vmatpush1.msra.mxu0 0.0
  %734 = vmatprep.subr.mxu0 0.0
  %735 = vmatpush1.msra.mxu0 0.0
  %736 = vmatprep.subr.mxu0 0.0
  %737 = vmatpush1.msra.mxu0 0.0
  %738 = vmatprep.subr.mxu0 0.0
  %739 = vmatpush1.msra.mxu0 0.0
  %740 = vmatprep.subr.mxu0 0.0
  %741 = vmatpush1.msra.mxu0 0.0
  %742 = vmatprep.subr.mxu0 0.0
  %743 = vmatpush1.msra.mxu0 0.0
  %744 = vmatprep.subr.mxu0 0.0
  %745 = vmatpush1.msra.mxu0 0.0
  %746 = vmatprep.subr.mxu0 0.0
  %747 = vmatpush1.msra.mxu0 0.0
  %748 = vmatprep.subr.mxu0 0.0
  %749 = vmatpush1.msra.mxu0 0.0
  %750 = vmatprep.subr.mxu0 0.0
  %751 = vmatpush1.msra.mxu0 0.0
  %752 = vmatprep.subr.mxu0 0.0
  %753 = vmatpush1.msra.mxu0 0.0
  %754 = vmatprep.mubr.f32.mxu0 0.0
  %755 = vmatmul.mubr.f32.gmra.mrb[0].mxu0 %v688
  %v756 = vpop.f32.mrb[0].mxu0
  %v757 = vadd.f32 %v665, %v756
  %v758 = vpop.f32.mrb[0].mxu0
  %759 = vdwg.mxu0
  %760 = vst [vmem:[%s6] sm:$0xff] %v757
  // Predicated region
  $region26: #{cnn_forward.1} parent=0 // pred_check
    _
  $region27: #{cnn_forward.1} parent=0 // pred_check_branch
    %762 = sbr.rel (0) target = $region29
  $region28: #{cnn_forward.1} parent=0 // pred_region
    _
  $region29: #{cnn_forward.1} parent=0 // pred_fallthru
    _
  // Predicated region
  $region30: #{cnn_forward.1} parent=0 // pred_check
    _
  $region31: #{cnn_forward.1} parent=0 // pred_check_branch
    %764 = sbr.rel (0) target = $region33
  $region32: #{cnn_forward.1} parent=0 // pred_region
    _
  $region33: #{cnn_forward.1} parent=0 // pred_fallthru
    _

</llo_original>
